<compile_context>
chip_gen: v5e
topology: v5e:2x2
jax: 0.10.0
libtpu: 0.0.40
codegen_flags: <defaults>
</compile_context>

<pallas_src>
import jax
import jax.numpy as jnp
from jax.experimental import pallas as pl
from jax.experimental.pallas import tpu as pltpu


def _round_up(x: int, m: int) -> int:
    return ((x + m - 1) // m) * m


def _rope_table_kernel(freqs_ref, out_ref):
    """One tile of the RoPE table in the lane-dense [positions, cos|sin] layout.

    freqs_ref: (1, hd)      f32 inverse frequencies, duplicated: [freqs | freqs]
    out_ref  : (tile, hd)   row p (global position tile_base + p):
                            lanes [0:half]  = cos(pos * freq)
                            lanes [half:hd] = sin(pos * freq)
    Angle-addition: pos*freq = (base + q)*freq  +  (r*chunk)*freq, p = r*chunk + q,
    so trig runs only on (chunk, hd) + (8, hd) instead of (tile, hd).
    """
    tile_n, hd = out_ref.shape
    half = hd // 2
    n_chunks = 8
    chunk = tile_n // n_chunks          # multiple of 8 by construction (tile % 64 == 0)

    inv_freq = freqs_ref[...]           # (1, hd) f32

    # sin(x) = cos(x - pi/2): fold the sin half into a per-lane phase so one
    # cos-style combine serves both halves.
    lane = jax.lax.broadcasted_iota(jnp.int32, (1, hd), 1)
    phase = jnp.where(lane >= half, jnp.float32(-jnp.pi / 2.0), jnp.float32(0.0))

    # Hoisted scalar: first global position of this tile.  int32 -> f32 is exact
    # for positions < 2^24 (same restriction as the f32 reference itself).
    base = pl.program_id(0) * tile_n

    # Fine angles: positions base + q, q in [0, chunk).  Dense (chunk, hd), EUP.
    q_pos = base + jax.lax.broadcasted_iota(jnp.int32, (chunk, hd), 0)
    ang_fine = q_pos.astype(jnp.float32) * inv_freq
    cos_f = jnp.cos(ang_fine)
    sin_f = jnp.sin(ang_fine)

    # Coarse angles: offsets r*chunk, r in [0, 8), plus the sin-lane phase.
    r_off = chunk * jax.lax.broadcasted_iota(jnp.int32, (n_chunks, hd), 0)
    ang_coarse = r_off.astype(jnp.float32) * inv_freq + phase
    cos_c = jnp.cos(ang_coarse)
    sin_c = jnp.sin(ang_coarse)

    # cos(A + B) = cosA*cosB - sinA*sinB, combined chunk by chunk.  Static
    # unroll; every slice start/size is a multiple of 8 (sublane aligned), and
    # the (1, hd) coarse rows broadcast along sublanes (natively supported).
    for r in range(n_chunks):
        out_ref[r * chunk:(r + 1) * chunk, :] = (
            cos_f * cos_c[r:r + 1, :] - sin_f * sin_c[r:r + 1, :]
        ).astype(out_ref.dtype)


def rope_cos_sin(freqs: jnp.ndarray, n_pos: int, *, max_tile: int = 1024,
                 dtype=jnp.float32):
    """Build the lane-dense [n_pos, 2*half] = [cos | sin] table with Pallas.

    freqs : [half] float32 inverse frequencies (exact reference values).
    dtype : output dtype (float32 default; bf16 halves writeback + downstream
            read bandwidth for consumers that tolerate it).
    """
    half = int(freqs.shape[0])
    hd = 2 * half

    # Tile must be a multiple of 64 so chunk = tile//8 is a multiple of 8
    # (8-row-aligned chunk stores in the kernel).
    max_tile = max(64, _round_up(max_tile, 64))
    n64 = _round_up(max(int(n_pos), 1), 64)
    if n64 <= 256:
        tile = n64                      # single small step
    else:
        # >= 2 grid steps (lets megacore parts shard the position range); cap the
        # tile so 2 output buffers stay tiny on every generation (v5e 16 MiB /
        # v7x 32 MiB scoped-VMEM defaults).
        tile = min(max_tile, _round_up((n64 + 1) // 2, 64))
    n_padded = _round_up(n64, tile)     # pad instead of shrinking the tile
    grid = n_padded // tile

    # Inverse freqs duplicated across the cos and sin lane halves.
    freqs_row = jnp.concatenate([freqs, freqs]).reshape(1, hd).astype(jnp.float32)

    cos_sin = pl.pallas_call(
        _rope_table_kernel,
        out_shape=jax.ShapeDtypeStruct((n_padded, hd), dtype),
        grid_spec=pltpu.PrefetchScalarGridSpec(
            num_scalar_prefetch=0,
            grid=(grid,),
            in_specs=[
                # Constant-index block: fetched once, not per step.
                pl.BlockSpec((1, hd), lambda i: (0, 0)),
            ],
            out_specs=pl.BlockSpec((tile, hd), lambda i: (i, 0)),
        ),
        compiler_params=pltpu.CompilerParams(
            dimension_semantics=("parallel",),
        ),
    )(freqs_row)

    if n_padded != n_pos:
        cos_sin = cos_sin[:n_pos]
    return cos_sin


def _build_tables(dim: int, end: int, theta: float):
    """Returns (freqs_cis [end, dim//2, 2, 2] f32, cos_sin [end, 2*(dim//2)] f32)."""
    half = dim // 2
    # Exact reference formula for the inverse frequencies.
    freqs = 1.0 / (theta ** (jnp.arange(0, dim, 2, dtype=jnp.float32)[:half] / dim))
    cos_sin = rope_cos_sin(freqs, end)              # Pallas hot path (single call)
    cos = cos_sin[:, :half]
    sin = cos_sin[:, half:]
    # One-time layout glue required by the module's forward() contract.
    freqs_cis = jnp.stack([cos, -sin, sin, cos], axis=-1).reshape(end, half, 2, 2)
    return freqs_cis, cos_sin


def precompute_freqs_cis(dim: int, end: int, theta: float = 10000.0,
                         rope_use_fp32_in_outer_product: bool = False):
    """JAX/Pallas equivalent of the torch precompute_freqs_cis.

    Returns float32 array of shape [end, dim // 2, 2, 2].
    Note: the outer product is always performed in float32 here (see module TODO).
    """
    del rope_use_fp32_in_outer_product  # kept for API parity
    return _build_tables(dim, end, theta)[0]


class RotaryEmbedding:
    """JAX/Pallas port of the PyTorch RotaryEmbedding module."""

    def __init__(self, theta: float, head_dim: int, max_seqlen: int = 1024,
                 rope_use_fp32_in_outer_product: bool = False):
        self.theta = theta
        self.head_dim = head_dim
        self.max_seqlen = max_seqlen
        self.rope_use_fp32_in_outer_product = rope_use_fp32_in_outer_product
        # freqs_cis: the [end, half, 2, 2] buffer forward() must serve (API parity).
        # cos_sin  : lane-dense [end, 2*half] = [cos | sin] table straight from the
        #            kernel -- the preferred buffer for consumers that fuse the
        #            rotation (no transpose / concat glue is built for it anymore).
        self.freqs_cis, self.cos_sin = _build_tables(head_dim, max_seqlen, theta)

    def reset_parameters(self):
        self.freqs_cis, self.cos_sin = _build_tables(
            self.head_dim, self.max_seqlen, self.theta
        )

    def __call__(self, seqlen=None, tok_idx=None):
        assert (seqlen is not None) or (tok_idx is not None), (
            "Should provide atleast seqlen or tok_idx"
        )
        if tok_idx is not None:
            # freqs_cis[tok_idx] -- gather along axis 0 (indexing glue).
            return jnp.take(self.freqs_cis, tok_idx, axis=0)
        return self.freqs_cis[0:seqlen]


def _reference_freqs_cis(dim, end, theta=10000.0):
    """Pure-jnp reference (mirrors the torch code) for verification."""
    half = dim // 2
    freqs = 1.0 / (theta ** (jnp.arange(0, dim, 2, dtype=jnp.float32)[:half] / dim))
    t = jnp.arange(end, dtype=jnp.float32)
    ang = jnp.outer(t, freqs).astype(jnp.float32)
    cos, sin = jnp.cos(ang), jnp.sin(ang)
    return jnp.stack([cos, -sin, sin, cos], axis=-1).reshape(end, half, 2, 2)


if __name__ == "__main__":
    key = jax.random.PRNGKey(0)
    theta = 10000.0

    # --- Config 1: small shapes (single-tile path) ---------------------------
    head_dim = 32
    max_seqlen = 64
    seqlen = 8

    rope = RotaryEmbedding(theta=theta, head_dim=head_dim, max_seqlen=max_seqlen)
    tok_idx = jax.random.randint(key, (seqlen,), 0, max_seqlen, dtype=jnp.int32)

    out_seqlen = rope(seqlen=seqlen)          # [seqlen, head_dim//2, 2, 2]
    out_tokidx = rope(tok_idx=tok_idx)        # [seqlen, head_dim//2, 2, 2]
    jax.block_until_ready(out_seqlen)
    jax.block_until_ready(out_tokidx)

    ref = _reference_freqs_cis(head_dim, max_seqlen, theta)
    ref_cos = ref[:, :, 0, 0]
    ref_sin = ref[:, :, 1, 0]
    assert out_seqlen.shape == (seqlen, head_dim // 2, 2, 2)
    assert out_tokidx.shape == (seqlen, head_dim // 2, 2, 2)
    assert out_seqlen.dtype == jnp.float32
    # f32 trig + angle-addition split contributes a few ULP of the angle (<=1e-5
    # absolute at angles <= 64) on top of in-kernel vs XLA trig differences.
    assert jnp.allclose(out_seqlen, ref[:seqlen], atol=5e-5, rtol=1e-5)
    assert jnp.allclose(out_tokidx, ref[tok_idx], atol=5e-5, rtol=1e-5)
    # Lane-dense companion table matches the reference cos/sin directly.
    assert rope.cos_sin.shape == (max_seqlen, head_dim)
    assert jnp.allclose(rope.cos_sin[:, :head_dim // 2], ref_cos, atol=5e-5, rtol=1e-5)
    assert jnp.allclose(rope.cos_sin[:, head_dim // 2:], ref_sin, atol=5e-5, rtol=1e-5)

    # --- Config 2: awkward length -> padding + 2 parallel grid steps ---------
    head_dim2 = 128
    max_seqlen2 = 520   # not a multiple of 64; tile=320, padded to 640, grid=2
    rope2 = RotaryEmbedding(theta=theta, head_dim=head_dim2, max_seqlen=max_seqlen2)
    out2 = rope2(seqlen=max_seqlen2)
    jax.block_until_ready(out2)

    ref2 = _reference_freqs_cis(head_dim2, max_seqlen2, theta)
    assert out2.shape == (max_seqlen2, head_dim2 // 2, 2, 2)
    # At angles ~5e2, f32 range reduction plus the angle-addition argument split
    # costs a few ULP of the angle (~1e-4 absolute worst case) vs the f32 reference.
    assert jnp.allclose(out2, ref2, atol=2e-4, rtol=1e-5)
    assert rope2.cos_sin.shape == (max_seqlen2, head_dim2)

    print("KERNEL_OK")
</pallas_src>

<mosaic_0001>
module attributes {stable_mosaic.version = 11 : i64} {
  func.func @_rope_table_kernel(%arg0: i32, %arg1: memref<1x32xf32, #tpu.memory_space<vmem>>, %arg2: memref<64x32xf32, #tpu.memory_space<vmem>>) attributes {dimension_semantics = [#tpu.dimension_semantics<parallel>], iteration_bounds = array<i64: 1>, scalar_prefetch = 0 : i64, scratch_operands = 0 : i64, tpu.core_type = #tpu.core_type<tc>, window_params = [{pipeline_mode = #tpu.pipeline_mode<synchronous>, transform_indices = @transform_0, window_bounds = array<i64: 1, 32>}, {transform_indices = @transform_1, window_bounds = array<i64: 64, 32>}]} {
    %c0 = arith.constant 0 : index
    %c0_0 = arith.constant 0 : index
    %0 = vector.load %arg1[%c0, %c0_0] : memref<1x32xf32, #tpu.memory_space<vmem>>, vector<1x32xf32>
    %1 = tpu.iota {dimensions = array<i32: 1>} : vector<1x32xi32>
    %c16_i32 = arith.constant 16 : i32
    %2 = vector.broadcast %c16_i32 : i32 to vector<1x32xi32>
    %3 = arith.cmpi sge, %1, %2 : vector<1x32xi32>
    %cst = arith.constant -1.57079637 : f32
    %cst_1 = arith.constant 0.000000e+00 : f32
    %4 = vector.broadcast %cst : f32 to vector<1x32xf32>
    %5 = vector.broadcast %cst_1 : f32 to vector<1x32xf32>
    %6 = arith.select %3, %4, %5 : vector<1x32xi1>, vector<1x32xf32>
    %c64_i32 = arith.constant 64 : i32
    %7 = arith.muli %arg0, %c64_i32 : i32
    %8 = tpu.iota {dimensions = array<i32: 0>} : vector<8x32xi32>
    %9 = vector.broadcast %7 : i32 to vector<8x32xi32>
    %10 = arith.addi %9, %8 : vector<8x32xi32>
    %11 = arith.sitofp %10 : vector<8x32xi32> to vector<8x32xf32>
    %12 = vector.broadcast %0 : vector<1x32xf32> to vector<8x32xf32>
    %13 = arith.mulf %11, %12 : vector<8x32xf32>
    %14 = math.cos %13 : vector<8x32xf32>
    %15 = math.sin %13 : vector<8x32xf32>
    %16 = tpu.iota {dimensions = array<i32: 0>} : vector<8x32xi32>
    %c8_i32 = arith.constant 8 : i32
    %17 = vector.broadcast %c8_i32 : i32 to vector<8x32xi32>
    %18 = arith.muli %17, %16 : vector<8x32xi32>
    %19 = arith.sitofp %18 : vector<8x32xi32> to vector<8x32xf32>
    %20 = vector.broadcast %0 : vector<1x32xf32> to vector<8x32xf32>
    %21 = arith.mulf %19, %20 : vector<8x32xf32>
    %22 = vector.broadcast %6 : vector<1x32xf32> to vector<8x32xf32>
    %23 = arith.addf %21, %22 : vector<8x32xf32>
    %24 = math.cos %23 : vector<8x32xf32>
    %25 = math.sin %23 : vector<8x32xf32>
    %26 = vector.extract_strided_slice %24 {offsets = [0, 0], sizes = [1, 32], strides = [1, 1]} : vector<8x32xf32> to vector<1x32xf32>
    %27 = vector.broadcast %26 : vector<1x32xf32> to vector<8x32xf32>
    %28 = arith.mulf %14, %27 : vector<8x32xf32>
    %29 = vector.extract_strided_slice %25 {offsets = [0, 0], sizes = [1, 32], strides = [1, 1]} : vector<8x32xf32> to vector<1x32xf32>
    %30 = vector.broadcast %29 : vector<1x32xf32> to vector<8x32xf32>
    %31 = arith.mulf %15, %30 : vector<8x32xf32>
    %32 = arith.subf %28, %31 : vector<8x32xf32>
    %c0_2 = arith.constant 0 : index
    %c0_3 = arith.constant 0 : index
    %33 = vector.load %arg2[%c0_2, %c0_3] : memref<64x32xf32, #tpu.memory_space<vmem>>, vector<8x32xf32>
    tpu.vector_store %arg2[%c0_2, %c0_3], %32 {strides = array<i32>} : memref<64x32xf32, #tpu.memory_space<vmem>>, vector<8x32xf32>,
    %34 = vector.extract_strided_slice %24 {offsets = [1, 0], sizes = [1, 32], strides = [1, 1]} : vector<8x32xf32> to vector<1x32xf32>
    %35 = vector.broadcast %34 : vector<1x32xf32> to vector<8x32xf32>
    %36 = arith.mulf %14, %35 : vector<8x32xf32>
    %37 = vector.extract_strided_slice %25 {offsets = [1, 0], sizes = [1, 32], strides = [1, 1]} : vector<8x32xf32> to vector<1x32xf32>
    %38 = vector.broadcast %37 : vector<1x32xf32> to vector<8x32xf32>
    %39 = arith.mulf %15, %38 : vector<8x32xf32>
    %40 = arith.subf %36, %39 : vector<8x32xf32>
    %c8 = arith.constant 8 : index
    %c0_4 = arith.constant 0 : index
    %41 = vector.load %arg2[%c8, %c0_4] : memref<64x32xf32, #tpu.memory_space<vmem>>, vector<8x32xf32>
    tpu.vector_store %arg2[%c8, %c0_4], %40 {strides = array<i32>} : memref<64x32xf32, #tpu.memory_space<vmem>>, vector<8x32xf32>,
    %42 = vector.extract_strided_slice %24 {offsets = [2, 0], sizes = [1, 32], strides = [1, 1]} : vector<8x32xf32> to vector<1x32xf32>
    %43 = vector.broadcast %42 : vector<1x32xf32> to vector<8x32xf32>
    %44 = arith.mulf %14, %43 : vector<8x32xf32>
    %45 = vector.extract_strided_slice %25 {offsets = [2, 0], sizes = [1, 32], strides = [1, 1]} : vector<8x32xf32> to vector<1x32xf32>
    %46 = vector.broadcast %45 : vector<1x32xf32> to vector<8x32xf32>
    %47 = arith.mulf %15, %46 : vector<8x32xf32>
    %48 = arith.subf %44, %47 : vector<8x32xf32>
    %c16 = arith.constant 16 : index
    %c0_5 = arith.constant 0 : index
    %49 = vector.load %arg2[%c16, %c0_5] : memref<64x32xf32, #tpu.memory_space<vmem>>, vector<8x32xf32>
    tpu.vector_store %arg2[%c16, %c0_5], %48 {strides = array<i32>} : memref<64x32xf32, #tpu.memory_space<vmem>>, vector<8x32xf32>,
    %50 = vector.extract_strided_slice %24 {offsets = [3, 0], sizes = [1, 32], strides = [1, 1]} : vector<8x32xf32> to vector<1x32xf32>
    %51 = vector.broadcast %50 : vector<1x32xf32> to vector<8x32xf32>
    %52 = arith.mulf %14, %51 : vector<8x32xf32>
    %53 = vector.extract_strided_slice %25 {offsets = [3, 0], sizes = [1, 32], strides = [1, 1]} : vector<8x32xf32> to vector<1x32xf32>
    %54 = vector.broadcast %53 : vector<1x32xf32> to vector<8x32xf32>
    %55 = arith.mulf %15, %54 : vector<8x32xf32>
    %56 = arith.subf %52, %55 : vector<8x32xf32>
    %c24 = arith.constant 24 : index
    %c0_6 = arith.constant 0 : index
    %57 = vector.load %arg2[%c24, %c0_6] : memref<64x32xf32, #tpu.memory_space<vmem>>, vector<8x32xf32>
    tpu.vector_store %arg2[%c24, %c0_6], %56 {strides = array<i32>} : memref<64x32xf32, #tpu.memory_space<vmem>>, vector<8x32xf32>,
    %58 = vector.extract_strided_slice %24 {offsets = [4, 0], sizes = [1, 32], strides = [1, 1]} : vector<8x32xf32> to vector<1x32xf32>
    %59 = vector.broadcast %58 : vector<1x32xf32> to vector<8x32xf32>
    %60 = arith.mulf %14, %59 : vector<8x32xf32>
    %61 = vector.extract_strided_slice %25 {offsets = [4, 0], sizes = [1, 32], strides = [1, 1]} : vector<8x32xf32> to vector<1x32xf32>
    %62 = vector.broadcast %61 : vector<1x32xf32> to vector<8x32xf32>
    %63 = arith.mulf %15, %62 : vector<8x32xf32>
    %64 = arith.subf %60, %63 : vector<8x32xf32>
    %c32 = arith.constant 32 : index
    %c0_7 = arith.constant 0 : index
    %65 = vector.load %arg2[%c32, %c0_7] : memref<64x32xf32, #tpu.memory_space<vmem>>, vector<8x32xf32>
    tpu.vector_store %arg2[%c32, %c0_7], %64 {strides = array<i32>} : memref<64x32xf32, #tpu.memory_space<vmem>>, vector<8x32xf32>,
    %66 = vector.extract_strided_slice %24 {offsets = [5, 0], sizes = [1, 32], strides = [1, 1]} : vector<8x32xf32> to vector<1x32xf32>
    %67 = vector.broadcast %66 : vector<1x32xf32> to vector<8x32xf32>
    %68 = arith.mulf %14, %67 : vector<8x32xf32>
    %69 = vector.extract_strided_slice %25 {offsets = [5, 0], sizes = [1, 32], strides = [1, 1]} : vector<8x32xf32> to vector<1x32xf32>
    %70 = vector.broadcast %69 : vector<1x32xf32> to vector<8x32xf32>
    %71 = arith.mulf %15, %70 : vector<8x32xf32>
    %72 = arith.subf %68, %71 : vector<8x32xf32>
    %c40 = arith.constant 40 : index
    %c0_8 = arith.constant 0 : index
    %73 = vector.load %arg2[%c40, %c0_8] : memref<64x32xf32, #tpu.memory_space<vmem>>, vector<8x32xf32>
    tpu.vector_store %arg2[%c40, %c0_8], %72 {strides = array<i32>} : memref<64x32xf32, #tpu.memory_space<vmem>>, vector<8x32xf32>,
    %74 = vector.extract_strided_slice %24 {offsets = [6, 0], sizes = [1, 32], strides = [1, 1]} : vector<8x32xf32> to vector<1x32xf32>
    %75 = vector.broadcast %74 : vector<1x32xf32> to vector<8x32xf32>
    %76 = arith.mulf %14, %75 : vector<8x32xf32>
    %77 = vector.extract_strided_slice %25 {offsets = [6, 0], sizes = [1, 32], strides = [1, 1]} : vector<8x32xf32> to vector<1x32xf32>
    %78 = vector.broadcast %77 : vector<1x32xf32> to vector<8x32xf32>
    %79 = arith.mulf %15, %78 : vector<8x32xf32>
    %80 = arith.subf %76, %79 : vector<8x32xf32>
    %c48 = arith.constant 48 : index
    %c0_9 = arith.constant 0 : index
    %81 = vector.load %arg2[%c48, %c0_9] : memref<64x32xf32, #tpu.memory_space<vmem>>, vector<8x32xf32>
    tpu.vector_store %arg2[%c48, %c0_9], %80 {strides = array<i32>} : memref<64x32xf32, #tpu.memory_space<vmem>>, vector<8x32xf32>,
    %82 = vector.extract_strided_slice %24 {offsets = [7, 0], sizes = [1, 32], strides = [1, 1]} : vector<8x32xf32> to vector<1x32xf32>
    %83 = vector.broadcast %82 : vector<1x32xf32> to vector<8x32xf32>
    %84 = arith.mulf %14, %83 : vector<8x32xf32>
    %85 = vector.extract_strided_slice %25 {offsets = [7, 0], sizes = [1, 32], strides = [1, 1]} : vector<8x32xf32> to vector<1x32xf32>
    %86 = vector.broadcast %85 : vector<1x32xf32> to vector<8x32xf32>
    %87 = arith.mulf %15, %86 : vector<8x32xf32>
    %88 = arith.subf %84, %87 : vector<8x32xf32>
    %c56 = arith.constant 56 : index
    %c0_10 = arith.constant 0 : index
    %89 = vector.load %arg2[%c56, %c0_10] : memref<64x32xf32, #tpu.memory_space<vmem>>, vector<8x32xf32>
    tpu.vector_store %arg2[%c56, %c0_10], %88 {strides = array<i32>} : memref<64x32xf32, #tpu.memory_space<vmem>>, vector<8x32xf32>,
    return
  }
  func.func @transform_0(%arg0: i32) -> (i32, i32) {
    %c0_i32 = arith.constant 0 : i32
    %c0_i32_0 = arith.constant 0 : i32
    %c0_i32_1 = arith.constant 0 : i32
    return %c0_i32, %c0_i32_0 : i32, i32
  }
  func.func @transform_1(%arg0: i32) -> (i32, i32) {
    %c0_i32 = arith.constant 0 : i32
    %c0_i32_0 = arith.constant 0 : i32
    return %arg0, %c0_i32 : i32, i32
  }
}

</mosaic_0001>

<llo_original>
// kernel: tpu_custom_call.1
$region0: #{tpu_custom_call.1}
  #allocation0 [shape = 'u32[]', space=smem, size = 0x4, offset = 0x4, fixed_abs, tag = 'smem constant byte address 0x4 - core index']
  #allocation1 [shape = 'u32[72,128]{1,0:T(1,128)}', space=vmem, size = 0x9000, scoped, tag = 'internal scratch']
  %s0 = inlined_call_operand.hbm [shape: f32[1,32], index: 0, kind: input, shape index: {}]
  %s1 = inlined_call_operand.vmem [shape: f32[64,32], index: 1, kind: output, shape index: {}]
  %s2 = sld [smem:[#allocation0]]
  $region18: #{tpu_custom_call.1} parent=0
    _
  %s4 = ssub.s32 1, %s2
  %s5 = scalar_select 0, %s4, %s2
  $region1: #{tpu_custom_call.1} parent=0
    #allocation2 [shape = 'u8[512]{0}', space=vmem, size = 0x400, scoped, tag = 'input window, operand 0, single buffered']
    #allocation3 [shape = 's32[1]{0}', space=sflag, size = 0x4, scoped, tag = 'scoped memory for tpu_custom_call.1']
    %6 = vsyncpa [#allocation3], 0
    // Predicated region
    $region2: #{tpu_custom_call.1} parent=1 // pred_check
      _
    $region3: #{tpu_custom_call.1} parent=1 // pred_check_branch
      %8 = sbr.rel (0) target = $region5
    $region4: #{tpu_custom_call.1} parent=1 // pred_region
      %10 = vsyncadd [#allocation3], 0
      %s12 = sshll.u32 %s0, 4
      %s13 = int_to_ptr.hbm [resolvable:$true] %s12
      %s14 = sshll.u32 [#allocation2], 4
      %s15 = int_to_ptr.vmem [resolvable:$true] %s14
      %17 = dma.hbm_to_vmem [thread:$0]  %s13, 16, %s15, [#allocation3]
    $region5: #{tpu_custom_call.1} parent=1 // pred_fallthru
      _
    // Predicated region
    $region6: #{tpu_custom_call.1} parent=1 // pred_check
      _
    $region7: #{tpu_custom_call.1} parent=1 // pred_check_branch
      %19 = sbr.rel (0) target = $region9
    $region8: #{tpu_custom_call.1} parent=1 // pred_region
      %21 = dma.done [#allocation3], 16
    $region9: #{tpu_custom_call.1} parent=1 // pred_fallthru
      _
    %v22 = vld [vmem:[#allocation2] sm:$0x1]
    %v23 = vlaneseq
    %v24 = vand.u32 %v23, 127
    %vm25 = vcmp.ge.s32.totalorder %v24, 16
    %v26 = vsel %vm25, -1.5707964, 0.0
    %s27 = smul.u32 0, 64
    %v28 = vlaneseq
    %v29 = vshrl.u32 %v28, 7
    %v30 = vstv %s27
    %v31 = vadd.s32 %v30, %v29
    %v32 = vcvt.s32.f32 %v31
    %v34 = vperm.slane %v22, 0
    %v36 = vmul.f32 %v32, %v34
    %v37 = vand.u32 2147483647, %v36
    %vm38 = vcmp.le.f32.partialorder %v37, 0.7853982
    %vm39 = vcmp.lt.s32.totalorder %v36, 0
    %v40 = vand.u32 %v36, 2139095040
    %v41 = vshrl.u32 %v40, 23
    %v42 = vsub.s32 %v41, 127
    %v43 = vand.u32 2147483647, %v36
    %v44 = vand.u32 %v43, 8388607
    %v45 = vor.u32 %v44, 8388608
    %v46 = vsub.s32 0, %v45
    %v47 = vadd.s32 %v42, 1
    %vm48 = vcmp.gt.s32.totalorder %v47, 0
    %v49 = vsel %vm48, %v47, 0
    %v50 = vshrl.u32 %v49, 5
    %v51 = vand.u32 %v49, 31
    %v52 = vsub.s32 32, %v51
    %v53 = vshrl.u32 683565275, %v52
    %v54 = vshll.u32 683565275, %v51
    %v55 = vshrl.u32 2475754826, %v52
    %v56 = vor.u32 %v54, %v55
    %v57 = vshll.u32 2475754826, %v51
    %v58 = vshrl.u32 2131351028, %v52
    %v59 = vor.u32 %v57, %v58
    %v60 = vshll.u32 2131351028, %v51
    %v61 = vshrl.u32 2102212464, %v52
    %v62 = vor.u32 %v60, %v61
    %v63 = vshll.u32 2102212464, %v51
    %v64 = vshrl.u32 920167782, %v52
    %v65 = vor.u32 %v63, %v64
    %v66 = vshll.u32 920167782, %v51
    %v67 = vshrl.u32 1326507024, %v52
    %v68 = vor.u32 %v66, %v67
    %vm69 = vcmp.lt.s32.totalorder %v50, 1
    %vm70 = vcmp.lt.s32.totalorder %v50, 2
    %vm71 = vcmp.lt.s32.totalorder %v50, 3
    %vm72 = vcmp.lt.s32.totalorder %v50, 4
    %v73 = vsel %vm69, %v53, %v56
    %v74 = vsel %vm72, %v62, 2102212464
    %v75 = vsel %vm71, %v59, %v74
    %v76 = vsel %vm70, %v73, %v75
    %v77 = vsel %vm69, %v56, %v59
    %v78 = vsel %vm72, %v65, 920167782
    %v79 = vsel %vm71, %v62, %v78
    %v80 = vsel %vm70, %v77, %v79
    %v81 = vsel %vm69, %v59, %v62
    %v82 = vsel %vm72, %v68, 1326507024
    %v83 = vsel %vm71, %v65, %v82
    %v84 = vsel %vm70, %v81, %v83
    %v85 = vshll.u32 %v45, 8
    %v86 = vand.u32 %v85, 65535
    %v87 = vshrl.u32 %v85, 16
    %v88 = vand.u32 %v84, 65535
    %v89 = vshrl.u32 %v84, 16
    %v90 = vmul.u32 %v86, %v88
    %v91 = vmul.u32 %v86, %v89
    %v92 = vmul.u32 %v87, %v88
    %v93 = vmul.u32 %v87, %v89
    %v94 = vshll.u32 %v91, 16
    %v95 = vshrl.u32 %v91, 16
    %v96 = vshll.u32 %v92, 16
    %v97 = vshrl.u32 %v92, 16
    %vm98 = vc.u32 %v90, %v94
    %v99 = vsel %vm98, 1, 0
    %v100 = vadd.s32 %v90, %v94
    %v101 = vadd.s32 %v93, %v99
    %vm102 = vc.u32 %v100, %v96
    %v103 = vsel %vm102, 1, 0
    %v104 = vadd.s32 %v100, %v96
    %v105 = vadd.s32 %v101, %v103
    %v106 = vadd.s32 %v105, %v95
    %v107 = vadd.s32 %v106, %v97
    %v108 = vand.u32 %v85, 65535
    %v109 = vshrl.u32 %v85, 16
    %v110 = vand.u32 %v80, 65535
    %v111 = vshrl.u32 %v80, 16
    %v112 = vmul.u32 %v108, %v110
    %v113 = vmul.u32 %v108, %v111
    %v114 = vmul.u32 %v109, %v110
    %v115 = vmul.u32 %v109, %v111
    %v116 = vshll.u32 %v113, 16
    %v117 = vshrl.u32 %v113, 16
    %v118 = vshll.u32 %v114, 16
    %v119 = vshrl.u32 %v114, 16
    %vm120 = vc.u32 %v112, %v116
    %v121 = vsel %vm120, 1, 0
    %v122 = vadd.s32 %v112, %v116
    %v123 = vadd.s32 %v115, %v121
    %vm124 = vc.u32 %v122, %v118
    %v125 = vsel %vm124, 1, 0
    %v126 = vadd.s32 %v122, %v118
    %v127 = vadd.s32 %v123, %v125
    %v128 = vadd.s32 %v127, %v117
    %v129 = vadd.s32 %v128, %v119
    %v130 = vmul.u32 %v85, %v76
    %v131 = vadd.s32 %v107, %v126
    %vm132 = vc.u32 %v107, %v126
    %v133 = vadd.s32 %v129, 1
    %v134 = vsel %vm132, %v133, %v129
    %v135 = vadd.s32 %v130, %v134
    %v136 = vadd.s32 %v135, 536870912
    %v137 = vshrl.u32 %v136, 30
    %v138 = vshll.u32 %v137, 30
    %v139 = vsub.s32 %v135, %v138
    %vm140 = vcmp.lt.s32.totalorder %v139, 0
    %v141 = vsub.s32 0, %v139
    %v142 = vsel %vm140, %v141, %v139
    %v143 = vclz %v142
    %v144 = vsub.s32 %v143, 2
    %vm145 = vcmp.gt.s32.totalorder 0, %v144
    %v146 = vsel %vm145, 0, %v144
    %v147 = vsub.s32 32, %v146
    %v148 = vshll.u32 %v139, %v146
    %v149 = vshrl.u32 %v131, %v147
    %v150 = vor.u32 %v148, %v149
    %v151 = vsub.s32 4294967266, %v146
    %v152 = vadd.s32 %v151, 127
    %v153 = vshll.u32 %v152, 23
    %v154 = vor.u32 4788187, %v153
    %v155 = vand.u32 2147483647, %v154
    %v157 = vcvt.s32.f32 %v150
    %v158 = vmul.f32 %v157, %v155
    %v159 = vxor.u32 %v158, 2147483648
    %v160 = vsel %vm39, %v159, %v158
    %v161 = vsub.s32 4, %v137
    %v162 = vsel %vm39, %v161, %v137
    %v163 = vsel %vm38, %v36, %v160
    %v164 = vsel %vm38, 0, %v162
    %v165 = vmul.f32 %v163, %v163
    %v166 = vmul.f32 %v165, -0.001358992
    %v167 = vadd.f32 %v166, 0.041655596
    %v168 = vmul.f32 %v165, %v167
    %v169 = vadd.f32 %v168, -0.4999988
    %v170 = vmul.f32 %v165, %v169
    %v171 = vadd.f32 1.0, %v170
    %v172 = vmul.f32 %v163, %v163
    %v173 = vmul.f32 %v172, -0.00019511016
    %v174 = vadd.f32 %v173, 0.008332121
    %v175 = vmul.f32 %v172, %v174
    %v176 = vadd.f32 %v175, -0.16666654
    %v177 = vmul.f32 %v172, %v176
    %v178 = vadd.f32 %v177, 1.0
    %v179 = vmul.f32 %v178, %v163
    %vm180 = vweird.f32 %v36
    %v181 = vand.u32 %v164, 3
    %vm182 = vcmp.lt.s32.totalorder %v181, 2
    %vm183 = vcmp.eq.s32.totalorder %v181, 0
    %v184 = vxor.u32 %v179, 2147483648
    %v185 = vsel %vm183, %v171, %v184
    %vm186 = vcmp.eq.s32.totalorder %v181, 2
    %v187 = vxor.u32 %v171, 2147483648
    %v188 = vsel %vm186, %v187, %v179
    %v189 = vsel %vm182, %v185, %v188
    %v190 = vsel %vm180, nan, %v189
    %v191 = vand.u32 2147483647, %v36
    %vm192 = vcmp.le.f32.partialorder %v191, 0.7853982
    %vm193 = vcmp.lt.s32.totalorder %v36, 0
    %v194 = vand.u32 %v36, 2139095040
    %v195 = vshrl.u32 %v194, 23
    %v196 = vsub.s32 %v195, 127
    %v197 = vand.u32 2147483647, %v36
    %v198 = vand.u32 %v197, 8388607
    %v199 = vor.u32 %v198, 8388608
    %v200 = vsub.s32 0, %v199
    %v201 = vadd.s32 %v196, 1
    %vm202 = vcmp.gt.s32.totalorder %v201, 0
    %v203 = vsel %vm202, %v201, 0
    %v204 = vshrl.u32 %v203, 5
    %v205 = vand.u32 %v203, 31
    %v206 = vsub.s32 32, %v205
    %v207 = vshrl.u32 683565275, %v206
    %v208 = vshll.u32 683565275, %v205
    %v209 = vshrl.u32 2475754826, %v206
    %v210 = vor.u32 %v208, %v209
    %v211 = vshll.u32 2475754826, %v205
    %v212 = vshrl.u32 2131351028, %v206
    %v213 = vor.u32 %v211, %v212
    %v214 = vshll.u32 2131351028, %v205
    %v215 = vshrl.u32 2102212464, %v206
    %v216 = vor.u32 %v214, %v215
    %v217 = vshll.u32 2102212464, %v205
    %v218 = vshrl.u32 920167782, %v206
    %v219 = vor.u32 %v217, %v218
    %v220 = vshll.u32 920167782, %v205
    %v221 = vshrl.u32 1326507024, %v206
    %v222 = vor.u32 %v220, %v221
    %vm223 = vcmp.lt.s32.totalorder %v204, 1
    %vm224 = vcmp.lt.s32.totalorder %v204, 2
    %vm225 = vcmp.lt.s32.totalorder %v204, 3
    %vm226 = vcmp.lt.s32.totalorder %v204, 4
    %v227 = vsel %vm223, %v207, %v210
    %v228 = vsel %vm226, %v216, 2102212464
    %v229 = vsel %vm225, %v213, %v228
    %v230 = vsel %vm224, %v227, %v229
    %v231 = vsel %vm223, %v210, %v213
    %v232 = vsel %vm226, %v219, 920167782
    %v233 = vsel %vm225, %v216, %v232
    %v234 = vsel %vm224, %v231, %v233
    %v235 = vsel %vm223, %v213, %v216
    %v236 = vsel %vm226, %v222, 1326507024
    %v237 = vsel %vm225, %v219, %v236
    %v238 = vsel %vm224, %v235, %v237
    %v239 = vshll.u32 %v199, 8
    %v240 = vand.u32 %v239, 65535
    %v241 = vshrl.u32 %v239, 16
    %v242 = vand.u32 %v238, 65535
    %v243 = vshrl.u32 %v238, 16
    %v244 = vmul.u32 %v240, %v242
    %v245 = vmul.u32 %v240, %v243
    %v246 = vmul.u32 %v241, %v242
    %v247 = vmul.u32 %v241, %v243
    %v248 = vshll.u32 %v245, 16
    %v249 = vshrl.u32 %v245, 16
    %v250 = vshll.u32 %v246, 16
    %v251 = vshrl.u32 %v246, 16
    %vm252 = vc.u32 %v244, %v248
    %v253 = vsel %vm252, 1, 0
    %v254 = vadd.s32 %v244, %v248
    %v255 = vadd.s32 %v247, %v253
    %vm256 = vc.u32 %v254, %v250
    %v257 = vsel %vm256, 1, 0
    %v258 = vadd.s32 %v254, %v250
    %v259 = vadd.s32 %v255, %v257
    %v260 = vadd.s32 %v259, %v249
    %v261 = vadd.s32 %v260, %v251
    %v262 = vand.u32 %v239, 65535
    %v263 = vshrl.u32 %v239, 16
    %v264 = vand.u32 %v234, 65535
    %v265 = vshrl.u32 %v234, 16
    %v266 = vmul.u32 %v262, %v264
    %v267 = vmul.u32 %v262, %v265
    %v268 = vmul.u32 %v263, %v264
    %v269 = vmul.u32 %v263, %v265
    %v270 = vshll.u32 %v267, 16
    %v271 = vshrl.u32 %v267, 16
    %v272 = vshll.u32 %v268, 16
    %v273 = vshrl.u32 %v268, 16
    %vm274 = vc.u32 %v266, %v270
    %v275 = vsel %vm274, 1, 0
    %v276 = vadd.s32 %v266, %v270
    %v277 = vadd.s32 %v269, %v275
    %vm278 = vc.u32 %v276, %v272
    %v279 = vsel %vm278, 1, 0
    %v280 = vadd.s32 %v276, %v272
    %v281 = vadd.s32 %v277, %v279
    %v282 = vadd.s32 %v281, %v271
    %v283 = vadd.s32 %v282, %v273
    %v284 = vmul.u32 %v239, %v230
    %v285 = vadd.s32 %v261, %v280
    %vm286 = vc.u32 %v261, %v280
    %v287 = vadd.s32 %v283, 1
    %v288 = vsel %vm286, %v287, %v283
    %v289 = vadd.s32 %v284, %v288
    %v290 = vadd.s32 %v289, 536870912
    %v291 = vshrl.u32 %v290, 30
    %v292 = vshll.u32 %v291, 30
    %v293 = vsub.s32 %v289, %v292
    %vm294 = vcmp.lt.s32.totalorder %v293, 0
    %v295 = vsub.s32 0, %v293
    %v296 = vsel %vm294, %v295, %v293
    %v297 = vclz %v296
    %v298 = vsub.s32 %v297, 2
    %vm299 = vcmp.gt.s32.totalorder 0, %v298
    %v300 = vsel %vm299, 0, %v298
    %v301 = vsub.s32 32, %v300
    %v302 = vshll.u32 %v293, %v300
    %v303 = vshrl.u32 %v285, %v301
    %v304 = vor.u32 %v302, %v303
    %v305 = vsub.s32 4294967266, %v300
    %v306 = vadd.s32 %v305, 127
    %v307 = vshll.u32 %v306, 23
    %v308 = vor.u32 4788187, %v307
    %v309 = vand.u32 2147483647, %v308
    %v311 = vcvt.s32.f32 %v304
    %v312 = vmul.f32 %v311, %v309
    %v313 = vxor.u32 %v312, 2147483648
    %v314 = vsel %vm193, %v313, %v312
    %v315 = vsub.s32 4, %v291
    %v316 = vsel %vm193, %v315, %v291
    %v317 = vsel %vm192, %v36, %v314
    %v318 = vsel %vm192, 0, %v316
    %v319 = vmul.f32 %v317, %v317
    %v320 = vmul.f32 %v319, -0.001358992
    %v321 = vadd.f32 %v320, 0.041655596
    %v322 = vmul.f32 %v319, %v321
    %v323 = vadd.f32 %v322, -0.4999988
    %v324 = vmul.f32 %v319, %v323
    %v325 = vadd.f32 1.0, %v324
    %v326 = vmul.f32 %v317, %v317
    %v327 = vmul.f32 %v326, -0.00019511016
    %v328 = vadd.f32 %v327, 0.008332121
    %v329 = vmul.f32 %v326, %v328
    %v330 = vadd.f32 %v329, -0.16666654
    %v331 = vmul.f32 %v326, %v330
    %v332 = vadd.f32 %v331, 1.0
    %v333 = vmul.f32 %v332, %v317
    %vm334 = vweird.f32 %v36
    %v335 = vadd.s32 %v318, 3
    %v336 = vand.u32 %v335, 3
    %vm337 = vcmp.lt.s32.totalorder %v336, 2
    %vm338 = vcmp.eq.s32.totalorder %v336, 0
    %v339 = vxor.u32 %v333, 2147483648
    %v340 = vsel %vm338, %v325, %v339
    %vm341 = vcmp.eq.s32.totalorder %v336, 2
    %v342 = vxor.u32 %v325, 2147483648
    %v343 = vsel %vm341, %v342, %v333
    %v344 = vsel %vm337, %v340, %v343
    %v345 = vsel %vm334, nan, %v344
    %v346 = vmul.u32 %v29, 8
    %v347 = vcvt.s32.f32 %v346
    %v348 = vmul.f32 %v347, %v34
    %v349 = vadd.f32 %v348, %v26
    %v350 = vand.u32 2147483647, %v349
    %vm351 = vcmp.le.f32.partialorder %v350, 0.7853982
    %vm352 = vcmp.lt.s32.totalorder %v349, 0
    %v353 = vand.u32 %v349, 2139095040
    %v354 = vshrl.u32 %v353, 23
    %v355 = vsub.s32 %v354, 127
    %v356 = vand.u32 2147483647, %v349
    %v357 = vand.u32 %v356, 8388607
    %v358 = vor.u32 %v357, 8388608
    %v359 = vsub.s32 0, %v358
    %v360 = vadd.s32 %v355, 1
    %vm361 = vcmp.gt.s32.totalorder %v360, 0
    %v362 = vsel %vm361, %v360, 0
    %v363 = vshrl.u32 %v362, 5
    %v364 = vand.u32 %v362, 31
    %v365 = vsub.s32 32, %v364
    %v366 = vshrl.u32 683565275, %v365
    %v367 = vshll.u32 683565275, %v364
    %v368 = vshrl.u32 2475754826, %v365
    %v369 = vor.u32 %v367, %v368
    %v370 = vshll.u32 2475754826, %v364
    %v371 = vshrl.u32 2131351028, %v365
    %v372 = vor.u32 %v370, %v371
    %v373 = vshll.u32 2131351028, %v364
    %v374 = vshrl.u32 2102212464, %v365
    %v375 = vor.u32 %v373, %v374
    %v376 = vshll.u32 2102212464, %v364
    %v377 = vshrl.u32 920167782, %v365
    %v378 = vor.u32 %v376, %v377
    %v379 = vshll.u32 920167782, %v364
    %v380 = vshrl.u32 1326507024, %v365
    %v381 = vor.u32 %v379, %v380
    %vm382 = vcmp.lt.s32.totalorder %v363, 1
    %vm383 = vcmp.lt.s32.totalorder %v363, 2
    %vm384 = vcmp.lt.s32.totalorder %v363, 3
    %vm385 = vcmp.lt.s32.totalorder %v363, 4
    %v386 = vsel %vm382, %v366, %v369
    %v387 = vsel %vm385, %v375, 2102212464
    %v388 = vsel %vm384, %v372, %v387
    %v389 = vsel %vm383, %v386, %v388
    %v390 = vsel %vm382, %v369, %v372
    %v391 = vsel %vm385, %v378, 920167782
    %v392 = vsel %vm384, %v375, %v391
    %v393 = vsel %vm383, %v390, %v392
    %v394 = vsel %vm382, %v372, %v375
    %v395 = vsel %vm385, %v381, 1326507024
    %v396 = vsel %vm384, %v378, %v395
    %v397 = vsel %vm383, %v394, %v396
    %v398 = vshll.u32 %v358, 8
    %v399 = vand.u32 %v398, 65535
    %v400 = vshrl.u32 %v398, 16
    %v401 = vand.u32 %v397, 65535
    %v402 = vshrl.u32 %v397, 16
    %v403 = vmul.u32 %v399, %v401
    %v404 = vmul.u32 %v399, %v402
    %v405 = vmul.u32 %v400, %v401
    %v406 = vmul.u32 %v400, %v402
    %v407 = vshll.u32 %v404, 16
    %v408 = vshrl.u32 %v404, 16
    %v409 = vshll.u32 %v405, 16
    %v410 = vshrl.u32 %v405, 16
    %vm411 = vc.u32 %v403, %v407
    %v412 = vsel %vm411, 1, 0
    %v413 = vadd.s32 %v403, %v407
    %v414 = vadd.s32 %v406, %v412
    %vm415 = vc.u32 %v413, %v409
    %v416 = vsel %vm415, 1, 0
    %v417 = vadd.s32 %v413, %v409
    %v418 = vadd.s32 %v414, %v416
    %v419 = vadd.s32 %v418, %v408
    %v420 = vadd.s32 %v419, %v410
    %v421 = vand.u32 %v398, 65535
    %v422 = vshrl.u32 %v398, 16
    %v423 = vand.u32 %v393, 65535
    %v424 = vshrl.u32 %v393, 16
    %v425 = vmul.u32 %v421, %v423
    %v426 = vmul.u32 %v421, %v424
    %v427 = vmul.u32 %v422, %v423
    %v428 = vmul.u32 %v422, %v424
    %v429 = vshll.u32 %v426, 16
    %v430 = vshrl.u32 %v426, 16
    %v431 = vshll.u32 %v427, 16
    %v432 = vshrl.u32 %v427, 16
    %vm433 = vc.u32 %v425, %v429
    %v434 = vsel %vm433, 1, 0
    %v435 = vadd.s32 %v425, %v429
    %v436 = vadd.s32 %v428, %v434
    %vm437 = vc.u32 %v435, %v431
    %v438 = vsel %vm437, 1, 0
    %v439 = vadd.s32 %v435, %v431
    %v440 = vadd.s32 %v436, %v438
    %v441 = vadd.s32 %v440, %v430
    %v442 = vadd.s32 %v441, %v432
    %v443 = vmul.u32 %v398, %v389
    %v444 = vadd.s32 %v420, %v439
    %vm445 = vc.u32 %v420, %v439
    %v446 = vadd.s32 %v442, 1
    %v447 = vsel %vm445, %v446, %v442
    %v448 = vadd.s32 %v443, %v447
    %v449 = vadd.s32 %v448, 536870912
    %v450 = vshrl.u32 %v449, 30
    %v451 = vshll.u32 %v450, 30
    %v452 = vsub.s32 %v448, %v451
    %vm453 = vcmp.lt.s32.totalorder %v452, 0
    %v454 = vsub.s32 0, %v452
    %v455 = vsel %vm453, %v454, %v452
    %v456 = vclz %v455
    %v457 = vsub.s32 %v456, 2
    %vm458 = vcmp.gt.s32.totalorder 0, %v457
    %v459 = vsel %vm458, 0, %v457
    %v460 = vsub.s32 32, %v459
    %v461 = vshll.u32 %v452, %v459
    %v462 = vshrl.u32 %v444, %v460
    %v463 = vor.u32 %v461, %v462
    %v464 = vsub.s32 4294967266, %v459
    %v465 = vadd.s32 %v464, 127
    %v466 = vshll.u32 %v465, 23
    %v467 = vor.u32 4788187, %v466
    %v468 = vand.u32 2147483647, %v467
    %v470 = vcvt.s32.f32 %v463
    %v471 = vmul.f32 %v470, %v468
    %v472 = vxor.u32 %v471, 2147483648
    %v473 = vsel %vm352, %v472, %v471
    %v474 = vsub.s32 4, %v450
    %v475 = vsel %vm352, %v474, %v450
    %v476 = vsel %vm351, %v349, %v473
    %v477 = vsel %vm351, 0, %v475
    %v478 = vmul.f32 %v476, %v476
    %v479 = vmul.f32 %v478, -0.001358992
    %v480 = vadd.f32 %v479, 0.041655596
    %v481 = vmul.f32 %v478, %v480
    %v482 = vadd.f32 %v481, -0.4999988
    %v483 = vmul.f32 %v478, %v482
    %v484 = vadd.f32 1.0, %v483
    %v485 = vmul.f32 %v476, %v476
    %v486 = vmul.f32 %v485, -0.00019511016
    %v487 = vadd.f32 %v486, 0.008332121
    %v488 = vmul.f32 %v485, %v487
    %v489 = vadd.f32 %v488, -0.16666654
    %v490 = vmul.f32 %v485, %v489
    %v491 = vadd.f32 %v490, 1.0
    %v492 = vmul.f32 %v491, %v476
    %vm493 = vweird.f32 %v349
    %v494 = vand.u32 %v477, 3
    %vm495 = vcmp.lt.s32.totalorder %v494, 2
    %vm496 = vcmp.eq.s32.totalorder %v494, 0
    %v497 = vxor.u32 %v492, 2147483648
    %v498 = vsel %vm496, %v484, %v497
    %vm499 = vcmp.eq.s32.totalorder %v494, 2
    %v500 = vxor.u32 %v484, 2147483648
    %v501 = vsel %vm499, %v500, %v492
    %v502 = vsel %vm495, %v498, %v501
    %v503 = vsel %vm493, nan, %v502
    %v504 = vand.u32 2147483647, %v349
    %vm505 = vcmp.le.f32.partialorder %v504, 0.7853982
    %vm506 = vcmp.lt.s32.totalorder %v349, 0
    %v507 = vand.u32 %v349, 2139095040
    %v508 = vshrl.u32 %v507, 23
    %v509 = vsub.s32 %v508, 127
    %v510 = vand.u32 2147483647, %v349
    %v511 = vand.u32 %v510, 8388607
    %v512 = vor.u32 %v511, 8388608
    %v513 = vsub.s32 0, %v512
    %v514 = vadd.s32 %v509, 1
    %vm515 = vcmp.gt.s32.totalorder %v514, 0
    %v516 = vsel %vm515, %v514, 0
    %v517 = vshrl.u32 %v516, 5
    %v518 = vand.u32 %v516, 31
    %v519 = vsub.s32 32, %v518
    %v520 = vshrl.u32 683565275, %v519
    %v521 = vshll.u32 683565275, %v518
    %v522 = vshrl.u32 2475754826, %v519
    %v523 = vor.u32 %v521, %v522
    %v524 = vshll.u32 2475754826, %v518
    %v525 = vshrl.u32 2131351028, %v519
    %v526 = vor.u32 %v524, %v525
    %v527 = vshll.u32 2131351028, %v518
    %v528 = vshrl.u32 2102212464, %v519
    %v529 = vor.u32 %v527, %v528
    %v530 = vshll.u32 2102212464, %v518
    %v531 = vshrl.u32 920167782, %v519
    %v532 = vor.u32 %v530, %v531
    %v533 = vshll.u32 920167782, %v518
    %v534 = vshrl.u32 1326507024, %v519
    %v535 = vor.u32 %v533, %v534
    %vm536 = vcmp.lt.s32.totalorder %v517, 1
    %vm537 = vcmp.lt.s32.totalorder %v517, 2
    %vm538 = vcmp.lt.s32.totalorder %v517, 3
    %vm539 = vcmp.lt.s32.totalorder %v517, 4
    %v540 = vsel %vm536, %v520, %v523
    %v541 = vsel %vm539, %v529, 2102212464
    %v542 = vsel %vm538, %v526, %v541
    %v543 = vsel %vm537, %v540, %v542
    %v544 = vsel %vm536, %v523, %v526
    %v545 = vsel %vm539, %v532, 920167782
    %v546 = vsel %vm538, %v529, %v545
    %v547 = vsel %vm537, %v544, %v546
    %v548 = vsel %vm536, %v526, %v529
    %v549 = vsel %vm539, %v535, 1326507024
    %v550 = vsel %vm538, %v532, %v549
    %v551 = vsel %vm537, %v548, %v550
    %v552 = vshll.u32 %v512, 8
    %v553 = vand.u32 %v552, 65535
    %v554 = vshrl.u32 %v552, 16
    %v555 = vand.u32 %v551, 65535
    %v556 = vshrl.u32 %v551, 16
    %v557 = vmul.u32 %v553, %v555
    %v558 = vmul.u32 %v553, %v556
    %v559 = vmul.u32 %v554, %v555
    %v560 = vmul.u32 %v554, %v556
    %v561 = vshll.u32 %v558, 16
    %v562 = vshrl.u32 %v558, 16
    %v563 = vshll.u32 %v559, 16
    %v564 = vshrl.u32 %v559, 16
    %vm565 = vc.u32 %v557, %v561
    %v566 = vsel %vm565, 1, 0
    %v567 = vadd.s32 %v557, %v561
    %v568 = vadd.s32 %v560, %v566
    %vm569 = vc.u32 %v567, %v563
    %v570 = vsel %vm569, 1, 0
    %v571 = vadd.s32 %v567, %v563
    %v572 = vadd.s32 %v568, %v570
    %v573 = vadd.s32 %v572, %v562
    %v574 = vadd.s32 %v573, %v564
    %v575 = vand.u32 %v552, 65535
    %v576 = vshrl.u32 %v552, 16
    %v577 = vand.u32 %v547, 65535
    %v578 = vshrl.u32 %v547, 16
    %v579 = vmul.u32 %v575, %v577
    %v580 = vmul.u32 %v575, %v578
    %v581 = vmul.u32 %v576, %v577
    %v582 = vmul.u32 %v576, %v578
    %v583 = vshll.u32 %v580, 16
    %v584 = vshrl.u32 %v580, 16
    %v585 = vshll.u32 %v581, 16
    %v586 = vshrl.u32 %v581, 16
    %vm587 = vc.u32 %v579, %v583
    %v588 = vsel %vm587, 1, 0
    %v589 = vadd.s32 %v579, %v583
    %v590 = vadd.s32 %v582, %v588
    %vm591 = vc.u32 %v589, %v585
    %v592 = vsel %vm591, 1, 0
    %v593 = vadd.s32 %v589, %v585
    %v594 = vadd.s32 %v590, %v592
    %v595 = vadd.s32 %v594, %v584
    %v596 = vadd.s32 %v595, %v586
    %v597 = vmul.u32 %v552, %v543
    %v598 = vadd.s32 %v574, %v593
    %vm599 = vc.u32 %v574, %v593
    %v600 = vadd.s32 %v596, 1
    %v601 = vsel %vm599, %v600, %v596
    %v602 = vadd.s32 %v597, %v601
    %v603 = vadd.s32 %v602, 536870912
    %v604 = vshrl.u32 %v603, 30
    %v605 = vshll.u32 %v604, 30
    %v606 = vsub.s32 %v602, %v605
    %vm607 = vcmp.lt.s32.totalorder %v606, 0
    %v608 = vsub.s32 0, %v606
    %v609 = vsel %vm607, %v608, %v606
    %v610 = vclz %v609
    %v611 = vsub.s32 %v610, 2
    %vm612 = vcmp.gt.s32.totalorder 0, %v611
    %v613 = vsel %vm612, 0, %v611
    %v614 = vsub.s32 32, %v613
    %v615 = vshll.u32 %v606, %v613
    %v616 = vshrl.u32 %v598, %v614
    %v617 = vor.u32 %v615, %v616
    %v618 = vsub.s32 4294967266, %v613
    %v619 = vadd.s32 %v618, 127
    %v620 = vshll.u32 %v619, 23
    %v621 = vor.u32 4788187, %v620
    %v622 = vand.u32 2147483647, %v621
    %v624 = vcvt.s32.f32 %v617
    %v625 = vmul.f32 %v624, %v622
    %v626 = vxor.u32 %v625, 2147483648
    %v627 = vsel %vm506, %v626, %v625
    %v628 = vsub.s32 4, %v604
    %v629 = vsel %vm506, %v628, %v604
    %v630 = vsel %vm505, %v349, %v627
    %v631 = vsel %vm505, 0, %v629
    %v632 = vmul.f32 %v630, %v630
    %v633 = vmul.f32 %v632, -0.001358992
    %v634 = vadd.f32 %v633, 0.041655596
    %v635 = vmul.f32 %v632, %v634
    %v636 = vadd.f32 %v635, -0.4999988
    %v637 = vmul.f32 %v632, %v636
    %v638 = vadd.f32 1.0, %v637
    %v639 = vmul.f32 %v630, %v630
    %v640 = vmul.f32 %v639, -0.00019511016
    %v641 = vadd.f32 %v640, 0.008332121
    %v642 = vmul.f32 %v639, %v641
    %v643 = vadd.f32 %v642, -0.16666654
    %v644 = vmul.f32 %v639, %v643
    %v645 = vadd.f32 %v644, 1.0
    %v646 = vmul.f32 %v645, %v630
    %vm647 = vweird.f32 %v349
    %v648 = vadd.s32 %v631, 3
    %v649 = vand.u32 %v648, 3
    %vm650 = vcmp.lt.s32.totalorder %v649, 2
    %vm651 = vcmp.eq.s32.totalorder %v649, 0
    %v652 = vxor.u32 %v646, 2147483648
    %v653 = vsel %vm651, %v638, %v652
    %vm654 = vcmp.eq.s32.totalorder %v649, 2
    %v655 = vxor.u32 %v638, 2147483648
    %v656 = vsel %vm654, %v655, %v646
    %v657 = vsel %vm650, %v653, %v656
    %v658 = vsel %vm647, nan, %v657
    %v659 = vperm.slane %v503, 0
    %v660 = vmul.f32 %v190, %v659
    %v661 = vperm.slane %v658, 0
    %v662 = vmul.f32 %v345, %v661
    %v663 = vsub.f32 %v660, %v662
    %vm664 = vcmask 261120
    %665 = vst.msk [vmem:[%s1] sm:$0xff] %vm664, %v663
    %v666 = vperm.slane %v503, 1
    %v667 = vmul.f32 %v190, %v666
    %v668 = vperm.slane %v658, 1
    %v669 = vmul.f32 %v345, %v668
    %v670 = vsub.f32 %v667, %v669
    %671 = vst.msk [vmem:[%s1 + $0x8] sm:$0xff] %vm664, %v670
    %v672 = vperm.slane %v503, 2
    %v673 = vmul.f32 %v190, %v672
    %v674 = vperm.slane %v658, 2
    %v675 = vmul.f32 %v345, %v674
    %v676 = vsub.f32 %v673, %v675
    %677 = vst.msk [vmem:[%s1 + $0x10] sm:$0xff] %vm664, %v676
    %v678 = vperm.slane %v503, 3
    %v679 = vmul.f32 %v190, %v678
    %v680 = vperm.slane %v658, 3
    %v681 = vmul.f32 %v345, %v680
    %v682 = vsub.f32 %v679, %v681
    %683 = vst.msk [vmem:[%s1 + $0x18] sm:$0xff] %vm664, %v682
    %v684 = vperm.slane %v503, 4
    %v685 = vmul.f32 %v190, %v684
    %v686 = vperm.slane %v658, 4
    %v687 = vmul.f32 %v345, %v686
    %v688 = vsub.f32 %v685, %v687
    %689 = vst.msk [vmem:[%s1 + $0x20] sm:$0xff] %vm664, %v688
    %v690 = vperm.slane %v503, 5
    %v691 = vmul.f32 %v190, %v690
    %v692 = vperm.slane %v658, 5
    %v693 = vmul.f32 %v345, %v692
    %v694 = vsub.f32 %v691, %v693
    %695 = vst.msk [vmem:[%s1 + $0x28] sm:$0xff] %vm664, %v694
    %v696 = vperm.slane %v503, 6
    %v697 = vmul.f32 %v190, %v696
    %v698 = vperm.slane %v658, 6
    %v699 = vmul.f32 %v345, %v698
    %v700 = vsub.f32 %v697, %v699
    %701 = vst.msk [vmem:[%s1 + $0x30] sm:$0xff] %vm664, %v700
    %v702 = vperm.slane %v503, 7
    %v703 = vmul.f32 %v190, %v702
    %v704 = vperm.slane %v658, 7
    %v705 = vmul.f32 %v345, %v704
    %v706 = vsub.f32 %v703, %v705
    %707 = vst.msk [vmem:[%s1 + $0x38] sm:$0xff] %vm664, %v706
    // Predicated region
    $region10: #{tpu_custom_call.1} parent=1 // pred_check
      _
    $region11: #{tpu_custom_call.1} parent=1 // pred_check_branch
      %709 = sbr.rel (0) target = $region13
    $region12: #{tpu_custom_call.1} parent=1 // pred_region
      _
    $region13: #{tpu_custom_call.1} parent=1 // pred_fallthru
      _
    // Predicated region
    $region14: #{tpu_custom_call.1} parent=1 // pred_check
      _
    $region15: #{tpu_custom_call.1} parent=1 // pred_check_branch
      %711 = sbr.rel (0) target = $region17
    $region16: #{tpu_custom_call.1} parent=1 // pred_region
      _
    $region17: #{tpu_custom_call.1} parent=1 // pred_fallthru
      _
    %712 = vsyncpa [#allocation3], 1

</llo_original>
